<compile_context>
chip_gen: v5e
topology: v5e:2x2
jax: 0.10.0
libtpu: 0.0.40
codegen_flags: <defaults>
</compile_context>

<pallas_src>
import jax
import jax.numpy as jnp
import numpy as np
from jax.experimental import pallas as pl
from jax.experimental.pallas import tpu as pltpu

_LANE = 128
_SUBLANE = 8


def _round_up(v, m):
    return (v + m - 1) // m * m


def _cdiv(a, b):
    return -(-a // b)


def _choose_tm(batch, max_rows=512):
    """Pick an M tile: multiple of 8, <= max_rows, and >=2 tiles when the
    batch is big enough so v7x can shard the parallel axis across both TCs."""
    m8 = _round_up(batch, _SUBLANE)
    n_tiles = max(1, _cdiv(m8, max_rows))
    if n_tiles == 1 and m8 >= 2 * _SUBLANE:
        n_tiles = 2
    return _round_up(_cdiv(m8, n_tiles), _SUBLANE)


def _concat_squash_kernel(t_ref, x_ref, w_ref, p_ref, o_ref):
    # t_ref : SMEM (1, 1)            scalar time
    # x_ref : VMEM (tm, dim_in)      activation tile (streams over the grid)
    # w_ref : VMEM (dim_in, dim_out) full pre-transposed layer weight (resident)
    # p_ref : VMEM (8, dim_out)      fused params: rows 0..3 = [b, gate_w, gate_b, bias_w]
    # o_ref : VMEM (tm, dim_out)     output tile
    t = t_ref[0, 0]
    b = p_ref[0:1, :]                                   # (1, dim_out)
    gw = p_ref[1:2, :]
    gb = p_ref[2:3, :]
    hw = p_ref[3:4, :]
    gate = jax.nn.sigmoid(t * gw + gb)                  # (1, dim_out), f32 (EUP)
    hbias = t * hw                                      # (1, dim_out)

    acc = jnp.dot(x_ref[...], w_ref[...],
                  preferred_element_type=jnp.float32)   # (tm, dim_out) MXU
    o_ref[...] = ((acc + b) * gate + hbias).astype(o_ref.dtype)


def concat_squash_linear(t, x, W, b, gate_w, gate_b, bias_w, *, max_tile_m=512):
    """t: scalar f32; x: (B, dim_in); W: (dim_out, dim_in); b: (dim_out,);
    gate_w: (dim_out, 1); gate_b: (dim_out,); bias_w: (dim_out, 1)."""
    B, dim_in = x.shape
    dim_out = W.shape[0]
    dtype = x.dtype
    itemsize = jnp.dtype(dtype).itemsize

    tm = _choose_tm(B, max_tile_m)
    num_m = _cdiv(B, tm)

    t2 = jnp.asarray(t, jnp.float32).reshape(1, 1)

    # Pre-transpose W into the canonical (K, N) layout; fused into the astype
    # copy in the wrapper so the kernel needs no XLU transposes.
    W_t = jnp.asarray(W, dtype).T                       # (dim_in, dim_out)

    # Fuse the four small per-feature vectors into one (8, dim_out) f32 slab
    # -> a single resident VMEM buffer instead of four tiny DMAs.
    params = jnp.stack(
        [b.reshape(-1), gate_w.reshape(-1), gate_b.reshape(-1), bias_w.reshape(-1)],
        axis=0).astype(jnp.float32)                     # (4, dim_out)
    params = jnp.pad(params, ((0, _SUBLANE - 4), (0, 0)))  # (8, dim_out)

    # Working set: double-buffered x/out tiles + resident W + param slab.
    work_bytes = (2 * tm * (dim_in + dim_out) * itemsize
                  + 2 * dim_in * dim_out * itemsize
                  + 2 * _SUBLANE * dim_out * 4
                  + 4 * 4)
    vmem_limit = int(min(max(2 * work_bytes, 32 * 1024 * 1024), 48 * 1024 * 1024))
    # TODO(synk): if dim_in*dim_out ever outgrows the VMEM budget, tile the K
    # axis with an f32 accumulator; trajectorynet's ConcatSquash dims never do.

    out = pl.pallas_call(
        _concat_squash_kernel,
        out_shape=jax.ShapeDtypeStruct((B, dim_out), dtype),
        grid=(num_m,),
        in_specs=[
            pl.BlockSpec((1, 1), lambda i: (0, 0), memory_space=pltpu.SMEM),
            pl.BlockSpec((tm, dim_in), lambda i: (i, 0)),       # streams over M
            pl.BlockSpec((dim_in, dim_out), lambda i: (0, 0)),  # resident W
            pl.BlockSpec((_SUBLANE, dim_out), lambda i: (0, 0)),  # resident params
        ],
        out_specs=pl.BlockSpec((tm, dim_out), lambda i: (i, 0)),
        compiler_params=pltpu.CompilerParams(
            dimension_semantics=("parallel",),
            vmem_limit_bytes=vmem_limit,
        ),
    )(t2, x, W_t, params)

    return out


def _reference(t, x, W, b, gate_w, gate_b, bias_w):
    lin = x @ W.T + b
    gate = jax.nn.sigmoid(t * gate_w.reshape(1, -1) + gate_b.reshape(1, -1))
    hbias = t * bias_w.reshape(1, -1)
    return lin * gate + hbias


if __name__ == "__main__":
    key = jax.random.PRNGKey(0)
    k_x, k_w, k_b, k_gw, k_gb, k_hw, k_t = jax.random.split(key, 7)

    batch, dim_in, dim_out = 8, 32, 64

    x = jax.random.normal(k_x, (batch, dim_in), dtype=jnp.float32)
    t = jax.random.uniform(k_t, (), dtype=jnp.float32)

    # Deterministic parameter init (PyTorch-Linear-like uniform bounds).
    lim_layer = 1.0 / np.sqrt(dim_in)
    W = jax.random.uniform(k_w, (dim_out, dim_in), minval=-lim_layer, maxval=lim_layer)
    b = jax.random.uniform(k_b, (dim_out,), minval=-lim_layer, maxval=lim_layer)
    lim_hyper = 1.0  # fan_in = 1
    gate_w = jax.random.uniform(k_gw, (dim_out, 1), minval=-lim_hyper, maxval=lim_hyper)
    gate_b = jax.random.uniform(k_gb, (dim_out,), minval=-lim_hyper, maxval=lim_hyper)
    bias_w = jax.random.uniform(k_hw, (dim_out, 1), minval=-lim_hyper, maxval=lim_hyper)

    out = concat_squash_linear(t, x, W, b, gate_w, gate_b, bias_w)
    out = jax.block_until_ready(out)

    ref = _reference(t, x, W, b, gate_w, gate_b, bias_w)
    assert out.shape == (batch, dim_out)
    assert np.allclose(np.asarray(out), np.asarray(ref), atol=1e-5, rtol=1e-5)

    # Ragged-batch path (last M tile partially out of bounds, >=2 M tiles).
    x2 = jax.random.normal(k_x, (23, dim_in), dtype=jnp.float32)
    out2 = jax.block_until_ready(
        concat_squash_linear(t, x2, W, b, gate_w, gate_b, bias_w))
    ref2 = _reference(t, x2, W, b, gate_w, gate_b, bias_w)
    assert out2.shape == (23, dim_out)
    assert np.allclose(np.asarray(out2), np.asarray(ref2), atol=1e-5, rtol=1e-5)

    print("KERNEL_OK")
</pallas_src>

<mosaic_0001>
module attributes {stable_mosaic.version = 11 : i64} {
  func.func @_concat_squash_kernel(%arg0: i32, %arg1: memref<1x1xf32, #tpu.memory_space<smem>>, %arg2: memref<8x32xf32, #tpu.memory_space<vmem>>, %arg3: memref<32x64xf32, #tpu.memory_space<vmem>>, %arg4: memref<8x64xf32, #tpu.memory_space<vmem>>, %arg5: memref<8x64xf32, #tpu.memory_space<vmem>>) attributes {dimension_semantics = [#tpu.dimension_semantics<parallel>], iteration_bounds = array<i64: 1>, scalar_prefetch = 0 : i64, scratch_operands = 0 : i64, tpu.core_type = #tpu.core_type<tc>, window_params = [{transform_indices = @transform_0, window_bounds = array<i64: 1, 1>}, {transform_indices = @transform_1, window_bounds = array<i64: 8, 32>}, {pipeline_mode = #tpu.pipeline_mode<synchronous>, transform_indices = @transform_2, window_bounds = array<i64: 32, 64>}, {pipeline_mode = #tpu.pipeline_mode<synchronous>, transform_indices = @transform_3, window_bounds = array<i64: 8, 64>}, {transform_indices = @transform_4, window_bounds = array<i64: 8, 64>}]} {
    %c0 = arith.constant 0 : index
    %c0_0 = arith.constant 0 : index
    %0 = memref.load %arg1[%c0, %c0_0] : memref<1x1xf32, #tpu.memory_space<smem>>
    %c0_1 = arith.constant 0 : index
    %c0_2 = arith.constant 0 : index
    %1 = vector.load %arg4[%c0_1, %c0_2] : memref<8x64xf32, #tpu.memory_space<vmem>>, vector<1x64xf32>
    %c1 = arith.constant 1 : index
    %c0_3 = arith.constant 0 : index
    %2 = vector.load %arg4[%c1, %c0_3] : memref<8x64xf32, #tpu.memory_space<vmem>>, vector<1x64xf32>
    %c2 = arith.constant 2 : index
    %c0_4 = arith.constant 0 : index
    %3 = vector.load %arg4[%c2, %c0_4] : memref<8x64xf32, #tpu.memory_space<vmem>>, vector<1x64xf32>
    %c3 = arith.constant 3 : index
    %c0_5 = arith.constant 0 : index
    %4 = vector.load %arg4[%c3, %c0_5] : memref<8x64xf32, #tpu.memory_space<vmem>>, vector<1x64xf32>
    %5 = vector.broadcast %0 : f32 to vector<1x64xf32>
    %6 = arith.mulf %5, %2 : vector<1x64xf32>
    %7 = arith.addf %6, %3 : vector<1x64xf32>
    %8 = arith.negf %7 : vector<1x64xf32>
    %9 = math.exp %8 : vector<1x64xf32>
    %cst = arith.constant 1.000000e+00 : f32
    %10 = vector.broadcast %cst : f32 to vector<1x64xf32>
    %11 = arith.addf %10, %9 : vector<1x64xf32>
    %12 = arith.divf %10, %11 : vector<1x64xf32>
    %13 = vector.broadcast %0 : f32 to vector<1x64xf32>
    %14 = arith.mulf %13, %4 : vector<1x64xf32>
    %c0_6 = arith.constant 0 : index
    %c0_7 = arith.constant 0 : index
    %15 = vector.load %arg2[%c0_6, %c0_7] : memref<8x32xf32, #tpu.memory_space<vmem>>, vector<8x32xf32>
    %c0_8 = arith.constant 0 : index
    %c0_9 = arith.constant 0 : index
    %16 = vector.load %arg3[%c0_8, %c0_9] : memref<32x64xf32, #tpu.memory_space<vmem>>, vector<32x64xf32>
    %cst_10 = arith.constant dense<0.000000e+00> : vector<8x64xf32>
    %17 = tpu.matmul %15, %16, %cst_10 {dimension_numbers = #tpu.dot_dimension_numbers<[1], [0], [0], [1], [0, 0, 1, 1], [], []>} : vector<8x32xf32>, vector<32x64xf32>, vector<8x64xf32> -> vector<8x64xf32>
    %18 = vector.broadcast %1 : vector<1x64xf32> to vector<8x64xf32>
    %19 = arith.addf %17, %18 : vector<8x64xf32>
    %20 = vector.broadcast %12 : vector<1x64xf32> to vector<8x64xf32>
    %21 = arith.mulf %19, %20 : vector<8x64xf32>
    %22 = vector.broadcast %14 : vector<1x64xf32> to vector<8x64xf32>
    %23 = arith.addf %21, %22 : vector<8x64xf32>
    %c0_11 = arith.constant 0 : index
    %c0_12 = arith.constant 0 : index
    %24 = vector.load %arg5[%c0_11, %c0_12] : memref<8x64xf32, #tpu.memory_space<vmem>>, vector<8x64xf32>
    tpu.vector_store %arg5[%c0_11, %c0_12], %23 {strides = array<i32>} : memref<8x64xf32, #tpu.memory_space<vmem>>, vector<8x64xf32>,
    return
  }
  func.func @transform_0(%arg0: i32) -> (i32, i32) {
    %c0_i32 = arith.constant 0 : i32
    %c0_i32_0 = arith.constant 0 : i32
    %c0_i32_1 = arith.constant 0 : i32
    return %c0_i32, %c0_i32_0 : i32, i32
  }
  func.func @transform_1(%arg0: i32) -> (i32, i32) {
    %c0_i32 = arith.constant 0 : i32
    %c0_i32_0 = arith.constant 0 : i32
    return %arg0, %c0_i32 : i32, i32
  }
  func.func @transform_2(%arg0: i32) -> (i32, i32) {
    %c0_i32 = arith.constant 0 : i32
    %c0_i32_0 = arith.constant 0 : i32
    %c0_i32_1 = arith.constant 0 : i32
    return %c0_i32, %c0_i32_0 : i32, i32
  }
  func.func @transform_3(%arg0: i32) -> (i32, i32) {
    %c0_i32 = arith.constant 0 : i32
    %c0_i32_0 = arith.constant 0 : i32
    %c0_i32_1 = arith.constant 0 : i32
    return %c0_i32, %c0_i32_0 : i32, i32
  }
  func.func @transform_4(%arg0: i32) -> (i32, i32) {
    %c0_i32 = arith.constant 0 : i32
    %c0_i32_0 = arith.constant 0 : i32
    return %arg0, %c0_i32 : i32, i32
  }
}

</mosaic_0001>

<llo_original>
// kernel: tpu_custom_call.1
$region0: #{tpu_custom_call.1}
  #allocation0 [shape = 'u32[]', space=smem, size = 0x4, offset = 0x4, fixed_abs, tag = 'smem constant byte address 0x4 - core index']
  #allocation1 [shape = 'u32[72,128]{1,0:T(1,128)}', space=vmem, size = 0x9000, scoped, tag = 'internal scratch']
  #allocation2 [shape = 'f32[1,1]{1,0:T(1,128)S(6)}', space=smem, size = 0x200, scoped, tag = 'scoped memory for tpu_custom_call.1']
  %s0 = inlined_call_operand.<no memory space> [shape: f32[1,1], index: 0, kind: input, shape index: {}]
  %s1 = inlined_call_operand.hbm [shape: f32[8,32], index: 1, kind: input, shape index: {}]
  %s2 = inlined_call_operand.hbm [shape: f32[32,64], index: 2, kind: input, shape index: {}]
  %s3 = inlined_call_operand.hbm [shape: f32[8,64], index: 3, kind: input, shape index: {}]
  %s4 = inlined_call_operand.hbm [shape: f32[8,64], index: 4, kind: output, shape index: {}]
  %s5 = sld [smem:[#allocation0]]
  $region38: #{tpu_custom_call.1} parent=0
    _
  %s7 = ssub.s32 1, %s5
  %s8 = scalar_select 0, %s7, %s5
  %9 = sst [smem:[#allocation2]] %s0
  $region1: #{tpu_custom_call.1} parent=0
    #allocation3 [shape = 'u8[4096]{0}', space=vmem, size = 0x1000, scoped, tag = 'input window, operand 1, single buffered']
    #allocation4 [shape = 's32[1]{0}', space=sflag, size = 0x4, scoped, tag = 'scoped memory for tpu_custom_call.1']
    #allocation5 [shape = 's32[1]{0}', space=sflag, size = 0x4, scoped, tag = 'scoped memory for tpu_custom_call.1']
    #allocation6 [shape = 'u8[16384]{0}', space=vmem, size = 0x4000, scoped, tag = 'input window, operand 2, single buffered']
    #allocation7 [shape = 's32[1]{0}', space=sflag, size = 0x4, scoped, tag = 'scoped memory for tpu_custom_call.1']
    #allocation8 [shape = 'u8[4096]{0}', space=vmem, size = 0x1000, scoped, tag = 'input window, operand 3, single buffered']
    #allocation9 [shape = 'u8[4096]{0}', space=vmem, size = 0x1000, scoped, tag = 'output window, operand 0, single buffered']
    %10 = vsyncpa [#allocation4], 0
    %11 = vsyncpa [#allocation7], 0
    %12 = vsyncpa [#allocation5], 0
    // Predicated region
    $region2: #{tpu_custom_call.1} parent=1 // pred_check
      _
    $region3: #{tpu_custom_call.1} parent=1 // pred_check_branch
      %14 = sbr.rel (0) target = $region5
    $region4: #{tpu_custom_call.1} parent=1 // pred_region
      _
    $region5: #{tpu_custom_call.1} parent=1 // pred_fallthru
      _
    // Predicated region
    $region6: #{tpu_custom_call.1} parent=1 // pred_check
      _
    $region7: #{tpu_custom_call.1} parent=1 // pred_check_branch
      %16 = sbr.rel (0) target = $region9
    $region8: #{tpu_custom_call.1} parent=1 // pred_region
      %18 = vsyncadd [#allocation4], 0
      %s20 = sshll.u32 %s1, 4
      %s21 = int_to_ptr.hbm [resolvable:$true] %s20
      %s22 = sshll.u32 [#allocation3], 4
      %s23 = int_to_ptr.vmem [resolvable:$true] %s22
      %25 = dma.hbm_to_vmem [thread:$0]  %s21, 128, %s23, [#allocation4]
    $region9: #{tpu_custom_call.1} parent=1 // pred_fallthru
      _
    // Predicated region
    $region10: #{tpu_custom_call.1} parent=1 // pred_check
      _
    $region11: #{tpu_custom_call.1} parent=1 // pred_check_branch
      %27 = sbr.rel (0) target = $region13
    $region12: #{tpu_custom_call.1} parent=1 // pred_region
      %29 = vsyncadd [#allocation7], 0
      %s30 = sshll.u32 %s2, 4
      %s31 = int_to_ptr.hbm [resolvable:$true] %s30
      %s32 = sshll.u32 [#allocation6], 4
      %s33 = int_to_ptr.vmem [resolvable:$true] %s32
      %38 = dma.hbm_to_vmem [thread:$0]  %s31, 512, %s33, [#allocation7], 128, 128, 8
    $region13: #{tpu_custom_call.1} parent=1 // pred_fallthru
      _
    // Predicated region
    $region14: #{tpu_custom_call.1} parent=1 // pred_check
      _
    $region15: #{tpu_custom_call.1} parent=1 // pred_check_branch
      %40 = sbr.rel (0) target = $region17
    $region16: #{tpu_custom_call.1} parent=1 // pred_region
      %42 = vsyncadd [#allocation7], 0
      %s44 = sshll.u32 %s3, 4
      %s45 = int_to_ptr.hbm [resolvable:$true] %s44
      %s46 = sshll.u32 [#allocation8], 4
      %s47 = int_to_ptr.vmem [resolvable:$true] %s46
      %49 = dma.hbm_to_vmem [thread:$0]  %s45, 128, %s47, [#allocation7]
    $region17: #{tpu_custom_call.1} parent=1 // pred_fallthru
      _
    // Predicated region
    $region18: #{tpu_custom_call.1} parent=1 // pred_check
      _
    $region19: #{tpu_custom_call.1} parent=1 // pred_check_branch
      %51 = sbr.rel (0) target = $region21
    $region20: #{tpu_custom_call.1} parent=1 // pred_region
      %53 = dma.done [#allocation4], 128
    $region21: #{tpu_custom_call.1} parent=1 // pred_fallthru
      _
    // Predicated region
    $region22: #{tpu_custom_call.1} parent=1 // pred_check
      _
    $region23: #{tpu_custom_call.1} parent=1 // pred_check_branch
      %55 = sbr.rel (0) target = $region25
    $region24: #{tpu_custom_call.1} parent=1 // pred_region
      %57 = dma.done [#allocation7], 512
    $region25: #{tpu_custom_call.1} parent=1 // pred_fallthru
      _
    // Predicated region
    $region26: #{tpu_custom_call.1} parent=1 // pred_check
      _
    $region27: #{tpu_custom_call.1} parent=1 // pred_check_branch
      %59 = sbr.rel (0) target = $region29
    $region28: #{tpu_custom_call.1} parent=1 // pred_region
      %61 = dma.done [#allocation7], 128
    $region29: #{tpu_custom_call.1} parent=1 // pred_fallthru
      _
    %s62 = sld [smem:[#allocation2]]
    %v63 = vld [vmem:[#allocation8] sm:$0x1]
    %v64 = vld [vmem:[#allocation8 + $0x1] sm:$0x1]
    %v65 = vld [vmem:[#allocation8 + $0x2] sm:$0x1]
    %v66 = vld [vmem:[#allocation8 + $0x3] sm:$0x1]
    %v67 = vstv %s62
    %v68 = vmul.f32 %v67, %v64
    %v69 = vadd.f32 %v68, %v65
    %v70 = vxor.u32 %v69, 2147483648
    %v71 = vmul.f32 %v70, 1.442695
    %v72 = vpow.pop %v71
    %v73 = vadd.f32 %v72, 1.0
    %v74 = vrcp.pop %v73
    %v75 = vmul.f32 %v73, %v74
    %v76 = vsub.f32 1.0, %v75
    %v77 = vmul.f32 %v74, %v76
    %v78 = vadd.f32 %v74, %v77
    %vm79 = vweird.f32 %v73
    %vm80 = vweird.f32 %v74
    %vm81 = vmor %vm79, %vm80
    %v82 = vsel %vm81, %v74, %v78
    %v83 = vand.u32 2147483647, %v73
    %vm84 = vcmp.eq.f32.partialorder %v83, 8.507059e+37
    %v85 = vand.u32 %v73, 2147483648
    %v86 = vor.u32 1.1754944e-38, %v85
    %v87 = vsel %vm84, %v86, %v82
    %v88 = vmul.f32 1.0, %v87
    %v89 = vmul.f32 %v67, %v66
    %v90 = vld [vmem:[#allocation3] sm:$0xff]
    %v91 = vld [vmem:[#allocation6] sm:$0xff]
    %v92 = vld [vmem:[#allocation6 + $0x8] sm:$0xff]
    %v93 = vld [vmem:[#allocation6 + $0x10] sm:$0xff]
    %v94 = vld [vmem:[#allocation6 + $0x18] sm:$0xff]
    %v95 = vperm.slane %v63, 0
    %vm96 = vcmask 261120
    %v98 = vsel %vm96, %v90, 0
    %100 = vmatpush.msra.mxu0 0.0
    %101 = vmatpush.msra.mxu0 0.0
    %102 = vmatpush.msra.mxu0 0.0
    %103 = vmatpush.msra.mxu0 0.0
    %104 = vmatpush.msra.mxu0 0.0
    %105 = vmatpush.msra.mxu0 0.0
    %106 = vmatpush.msra.mxu0 0.0
    %107 = vmatpush.msra.mxu0 0.0
    %108 = vmatpush.msra.mxu0 0.0
    %109 = vmatpush.msra.mxu0 0.0
    %110 = vmatpush.msra.mxu0 0.0
    %111 = vmatpush.msra.mxu0 0.0
    %112 = vmatpush.msra.mxu0 %v94
    %113 = vmatpush.msra.mxu0 %v93
    %114 = vmatpush.msra.mxu0 %v92
    %115 = vmatpush.msra.mxu0 %v91
    %116 = vmatmul.f32.gmra.mxu0 %v98
    %v117 = vpop.f32.mrf.mxu0
    %v118 = vadd.f32 %v95, %v117
    %119 = vdwg.mxu0
    %v120 = vperm.slane %v88, 0
    %v121 = vmul.f32 %v118, %v120
    %v122 = vperm.slane %v89, 0
    %v123 = vadd.f32 %v121, %v122
    %vm124 = vcmask 523264
    %125 = vst.msk [vmem:[#allocation9] sm:$0xff] %vm124, %v123
    // Predicated region
    $region30: #{tpu_custom_call.1} parent=1 // pred_check
      _
    $region31: #{tpu_custom_call.1} parent=1 // pred_check_branch
      %127 = sbr.rel (0) target = $region33
    $region32: #{tpu_custom_call.1} parent=1 // pred_region
      %129 = vsyncadd [#allocation5], 0
      %s131 = sshll.u32 [#allocation9], 4
      %s132 = int_to_ptr.vmem [resolvable:$true] %s131
      %s133 = sshll.u32 %s4, 4
      %s134 = int_to_ptr.hbm [resolvable:$true] %s133
      %136 = dma.vmem_to_hbm [thread:$0]  %s132, 128, %s134, [#allocation5]
    $region33: #{tpu_custom_call.1} parent=1 // pred_fallthru
      _
    // Predicated region
    $region34: #{tpu_custom_call.1} parent=1 // pred_check
      _
    $region35: #{tpu_custom_call.1} parent=1 // pred_check_branch
      %138 = sbr.rel (0) target = $region37
    $region36: #{tpu_custom_call.1} parent=1 // pred_region
      %140 = dma.done [#allocation5], 128
    $region37: #{tpu_custom_call.1} parent=1 // pred_fallthru
      _
    %141 = vsyncpa [#allocation4], 1
    %142 = vsyncpa [#allocation7], 1
    %143 = vsyncpa [#allocation5], 1

</llo_original>
